<compile_context>
chip_gen: v7x
topology: tpu7x:2x2x1
jax: 0.10.0
libtpu: 0.0.40
codegen_flags: <defaults>
</compile_context>

<pallas_src>
import functools

import jax
import jax.numpy as jnp
from jax.experimental import pallas as pl
from jax.experimental.pallas import tpu as pltpu

LANE = 128  # TPU lane width / MXU alignment target


def _round_up(x, m):
    return ((x + m - 1) // m) * m


def mlp_kernel(x_ref, w1_ref, b1_ref, w2_ref, b2_ref, w3_ref, b3_ref, o_ref):
    # Layer 1: Linear + ReLU. K = true input width (compute is nowhere near the
    # bottleneck, so an unaligned K is fine); N lane-aligned.
    h1 = jnp.dot(x_ref[...], w1_ref[...], preferred_element_type=jnp.float32)
    h1 = jnp.maximum(h1 + b1_ref[...], 0.0)

    # Layer 2: Linear + ReLU (K and N lane-aligned).
    h2 = jnp.dot(h1, w2_ref[...], preferred_element_type=jnp.float32)
    h2 = jnp.maximum(h2 + b2_ref[...], 0.0)

    # Output head (out_dim == 1), lane-dense:
    # w3 is an (8, h2_pad) slab (row 0 = w3^T, rows 1..7 = 0). Contract the feature
    # axis of both operands (transposed-RHS matmul, same pattern as q @ k^T) to get
    # an (8, tb) result, then a sublane reduce keeps row 0 -> logits of shape (1, tb).
    prod = jax.lax.dot_general(
        w3_ref[...], h2,
        dimension_numbers=(((1,), (1,)), ((), ())),
        preferred_element_type=jnp.float32)                      # (8, tb)
    logits = jnp.sum(prod, axis=0, keepdims=True) + b3_ref[0, 0]  # (1, tb)
    o_ref[...] = jax.nn.sigmoid(logits).astype(o_ref.dtype)


def prepare_params(params):
    """One-time (out-of-per-call-path) padding / layout prep of the weights.

    Input params: w{i} as (in, out) == W_torch.T, b{i} as (1, out).
    Returns VMEM/SMEM-ready arrays: N dims lane-padded, head weight as an 8-row slab,
    b3 as a (1, 1) scalar for SMEM.
    """
    w1, b1 = params["w1"], params["b1"]
    w2, b2 = params["w2"], params["b2"]
    w3, b3 = params["w3"], params["b3"]

    in_dim, h1 = w1.shape
    h2 = w2.shape[1]
    h1_pad = _round_up(h1, LANE)
    h2_pad = _round_up(h2, LANE)
    f32 = jnp.float32

    w1_p = jnp.zeros((in_dim, h1_pad), f32).at[:, :h1].set(w1.astype(f32))
    b1_p = jnp.zeros((1, h1_pad), f32).at[:, :h1].set(b1.astype(f32).reshape(1, h1))
    w2_p = jnp.zeros((h1_pad, h2_pad), f32).at[:h1, :h2].set(w2.astype(f32))
    b2_p = jnp.zeros((1, h2_pad), f32).at[:, :h2].set(b2.astype(f32).reshape(1, h2))
    # Head weight: 8 sublane-aligned rows, only row 0 is real.
    w3_p = jnp.zeros((8, h2_pad), f32).at[0, :h2].set(w3.astype(f32).reshape(h2))
    b3_p = b3.astype(f32).reshape(1, 1)

    return {"w1": w1_p, "b1": b1_p, "w2": w2_p, "b2": b2_p, "w3": w3_p, "b3": b3_p}


@functools.partial(jax.jit, static_argnames=("block_batch",))
def mlp_forward(x, prepared, *, block_batch=4096):
    """x: (B, input_size) f32. prepared: output of prepare_params()."""
    w1, b1 = prepared["w1"], prepared["b1"]
    w2, b2 = prepared["w2"], prepared["b2"]
    w3, b3 = prepared["w3"], prepared["b3"]

    B, in_dim = x.shape
    h1_pad = w1.shape[1]
    h2_pad = w2.shape[1]

    x = x.astype(jnp.float32)
    # Pad the batch only to a sublane multiple (8) when needed. No lane padding of x.
    b_pad = _round_up(max(B, 8), 8)
    if b_pad != B:
        x = jnp.zeros((b_pad, in_dim), jnp.float32).at[:B].set(x)

    # Batch tile: big enough to amortize the ~0.35us/step pipeline overhead.
    # If a large batch would fit in one tile, split into 2 so both v7x TCs are used.
    block_batch = _round_up(max(block_batch, 8), 8)
    if b_pad > block_batch:
        tb = block_batch
    elif b_pad >= 512:
        tb = _round_up(pl.cdiv(b_pad, 2), 8)
    else:
        tb = b_pad
    n_tiles = pl.cdiv(b_pad, tb)  # partial last tile allowed (clipped DMA)

    const2 = lambda i: (0, 0)  # weights/biases: DMA'd once, resident across steps

    out_p = pl.pallas_call(
        mlp_kernel,
        out_shape=jax.ShapeDtypeStruct((n_tiles, tb), jnp.float32),
        grid=(n_tiles,),
        in_specs=[
            pl.BlockSpec((tb, in_dim), lambda i: (i, 0)),       # streamed activations
            pl.BlockSpec((in_dim, h1_pad), const2),
            pl.BlockSpec((1, h1_pad), const2),
            pl.BlockSpec((h1_pad, h2_pad), const2),
            pl.BlockSpec((1, h2_pad), const2),
            pl.BlockSpec((8, h2_pad), const2),
            pl.BlockSpec(memory_space=pltpu.MemorySpace.SMEM),  # b3 scalar in SMEM
        ],
        out_specs=pl.BlockSpec((1, tb), lambda i: (i, 0)),      # lane-dense output
        compiler_params=pltpu.CompilerParams(
            dimension_semantics=("parallel",),
            vmem_limit_bytes=32 * 1024 * 1024,
        ),
    )(x, w1, b1, w2, b2, w3, b3)

    # (n_tiles, tb) -> flat batch order; drop pad/garbage rows; present as (B, 1).
    return out_p.reshape(-1)[:B].reshape(B, 1)


def init_params(key, input_size, hidden_sizes):
    """Deterministic init mimicking nn.Linear default: U(-1/sqrt(in), 1/sqrt(in))."""
    sizes = [input_size] + list(hidden_sizes) + [1]
    params = {}
    for i, (fan_in, fan_out) in enumerate(zip(sizes[:-1], sizes[1:]), start=1):
        key, kw, kb = jax.random.split(key, 3)
        bound = 1.0 / (fan_in ** 0.5)
        # stored as (in, out) == W_torch.T
        params[f"w{i}"] = jax.random.uniform(
            kw, (fan_in, fan_out), jnp.float32, -bound, bound)
        params[f"b{i}"] = jax.random.uniform(
            kb, (1, fan_out), jnp.float32, -bound, bound)
    return params


if __name__ == "__main__":
    # model_args equivalent: input_size=32, hidden_sizes=[128, 64], dropout=0.0,
    # batch_norm=False, activation='ReLU' (defaults -> no dropout, no BN).
    input_size = 32
    hidden_sizes = [128, 64]
    batch = 8

    key = jax.random.PRNGKey(0)
    key, kx = jax.random.split(key)
    x = jax.random.normal(kx, (batch, input_size), jnp.float32)
    params = init_params(key, input_size, hidden_sizes)
    prepared = prepare_params(params)   # hoisted: padding/layout prep runs once

    out = mlp_forward(x, prepared)
    out = jax.block_until_ready(out)

    # Pure-JAX reference (same math outside Pallas, on the unpadded params).
    h = jnp.maximum(x @ params["w1"] + params["b1"], 0.0)
    h = jnp.maximum(h @ params["w2"] + params["b2"], 0.0)
    ref = jax.nn.sigmoid(h @ params["w3"] + params["b3"])

    assert out.shape == (batch, 1)
    assert jnp.allclose(out, ref, atol=1e-5, rtol=1e-5)

    print("KERNEL_OK")
</pallas_src>

<mosaic_0001>
module attributes {stable_mosaic.version = 11 : i64} {
  func.func @mlp_kernel(%arg0: i32, %arg1: memref<8x32xf32, #tpu.memory_space<vmem>>, %arg2: memref<32x128xf32, #tpu.memory_space<vmem>>, %arg3: memref<1x128xf32, #tpu.memory_space<vmem>>, %arg4: memref<128x128xf32, #tpu.memory_space<vmem>>, %arg5: memref<1x128xf32, #tpu.memory_space<vmem>>, %arg6: memref<8x128xf32, #tpu.memory_space<vmem>>, %arg7: memref<1x1xf32, #tpu.memory_space<smem>>, %arg8: memref<1x8xf32, #tpu.memory_space<vmem>>) attributes {dimension_semantics = [#tpu.dimension_semantics<parallel>], iteration_bounds = array<i64: 1>, scalar_prefetch = 0 : i64, scratch_operands = 0 : i64, tpu.core_type = #tpu.core_type<tc>, window_params = [{transform_indices = @transform_0, window_bounds = array<i64: 8, 32>}, {pipeline_mode = #tpu.pipeline_mode<synchronous>, transform_indices = @transform_1, window_bounds = array<i64: 32, 128>}, {pipeline_mode = #tpu.pipeline_mode<synchronous>, transform_indices = @transform_2, window_bounds = array<i64: 1, 128>}, {pipeline_mode = #tpu.pipeline_mode<synchronous>, transform_indices = @transform_3, window_bounds = array<i64: 128, 128>}, {pipeline_mode = #tpu.pipeline_mode<synchronous>, transform_indices = @transform_4, window_bounds = array<i64: 1, 128>}, {pipeline_mode = #tpu.pipeline_mode<synchronous>, transform_indices = @transform_5, window_bounds = array<i64: 8, 128>}, {transform_indices = @transform_6, window_bounds = array<i64: 1, 1>}, {transform_indices = @transform_7, window_bounds = array<i64: 1, 8>}]} {
    %c0 = arith.constant 0 : index
    %c0_0 = arith.constant 0 : index
    %0 = vector.load %arg1[%c0, %c0_0] : memref<8x32xf32, #tpu.memory_space<vmem>>, vector<8x32xf32>
    %c0_1 = arith.constant 0 : index
    %c0_2 = arith.constant 0 : index
    %1 = vector.load %arg2[%c0_1, %c0_2] : memref<32x128xf32, #tpu.memory_space<vmem>>, vector<32x128xf32>
    %cst = arith.constant dense<0.000000e+00> : vector<8x128xf32>
    %2 = tpu.matmul %0, %1, %cst {dimension_numbers = #tpu.dot_dimension_numbers<[1], [0], [0], [1], [0, 0, 1, 1], [], []>} : vector<8x32xf32>, vector<32x128xf32>, vector<8x128xf32> -> vector<8x128xf32>
    %c0_3 = arith.constant 0 : index
    %c0_4 = arith.constant 0 : index
    %3 = vector.load %arg3[%c0_3, %c0_4] : memref<1x128xf32, #tpu.memory_space<vmem>>, vector<1x128xf32>
    %4 = vector.broadcast %3 : vector<1x128xf32> to vector<8x128xf32>
    %5 = arith.addf %2, %4 : vector<8x128xf32>
    %cst_5 = arith.constant 0.000000e+00 : f32
    %6 = vector.broadcast %cst_5 : f32 to vector<8x128xf32>
    %7 = arith.maximumf %5, %6 : vector<8x128xf32>
    %c0_6 = arith.constant 0 : index
    %c0_7 = arith.constant 0 : index
    %8 = vector.load %arg4[%c0_6, %c0_7] : memref<128x128xf32, #tpu.memory_space<vmem>>, vector<128x128xf32>
    %cst_8 = arith.constant dense<0.000000e+00> : vector<8x128xf32>
    %9 = tpu.matmul %7, %8, %cst_8 {dimension_numbers = #tpu.dot_dimension_numbers<[1], [0], [0], [1], [0, 0, 1, 1], [], []>} : vector<8x128xf32>, vector<128x128xf32>, vector<8x128xf32> -> vector<8x128xf32>
    %c0_9 = arith.constant 0 : index
    %c0_10 = arith.constant 0 : index
    %10 = vector.load %arg5[%c0_9, %c0_10] : memref<1x128xf32, #tpu.memory_space<vmem>>, vector<1x128xf32>
    %11 = vector.broadcast %10 : vector<1x128xf32> to vector<8x128xf32>
    %12 = arith.addf %9, %11 : vector<8x128xf32>
    %cst_11 = arith.constant 0.000000e+00 : f32
    %13 = vector.broadcast %cst_11 : f32 to vector<8x128xf32>
    %14 = arith.maximumf %12, %13 : vector<8x128xf32>
    %c0_12 = arith.constant 0 : index
    %c0_13 = arith.constant 0 : index
    %15 = vector.load %arg6[%c0_12, %c0_13] : memref<8x128xf32, #tpu.memory_space<vmem>>, vector<8x128xf32>
    %cst_14 = arith.constant dense<0.000000e+00> : vector<8x8xf32>
    %16 = tpu.matmul %15, %14, %cst_14 {dimension_numbers = #tpu.dot_dimension_numbers<[1], [1], [0], [0], [0, 0, 1, 0], [], []>} : vector<8x128xf32>, vector<8x128xf32>, vector<8x8xf32> -> vector<8x8xf32>
    %cst_15 = arith.constant dense<0.000000e+00> : vector<8xf32>
    %17 = vector.multi_reduction <add>, %16, %cst_15 [0] : vector<8x8xf32> to vector<8xf32>
    %18 = vector.shape_cast %17 : vector<8xf32> to vector<1x8xf32>
    %c0_16 = arith.constant 0 : index
    %c0_17 = arith.constant 0 : index
    %19 = memref.load %arg7[%c0_16, %c0_17] : memref<1x1xf32, #tpu.memory_space<smem>>
    %20 = vector.broadcast %19 : f32 to vector<1x8xf32>
    %21 = arith.addf %18, %20 : vector<1x8xf32>
    %22 = arith.negf %21 : vector<1x8xf32>
    %23 = math.exp %22 : vector<1x8xf32>
    %cst_18 = arith.constant 1.000000e+00 : f32
    %24 = vector.broadcast %cst_18 : f32 to vector<1x8xf32>
    %25 = arith.addf %24, %23 : vector<1x8xf32>
    %26 = arith.divf %24, %25 : vector<1x8xf32>
    %c0_19 = arith.constant 0 : index
    %c0_20 = arith.constant 0 : index
    %27 = vector.load %arg8[%c0_19, %c0_20] : memref<1x8xf32, #tpu.memory_space<vmem>>, vector<1x8xf32>
    tpu.vector_store %arg8[%c0_19, %c0_20], %26 {strides = array<i32>} : memref<1x8xf32, #tpu.memory_space<vmem>>, vector<1x8xf32>,
    return
  }
  func.func @transform_0(%arg0: i32) -> (i32, i32) {
    %c0_i32 = arith.constant 0 : i32
    %c0_i32_0 = arith.constant 0 : i32
    return %arg0, %c0_i32 : i32, i32
  }
  func.func @transform_1(%arg0: i32) -> (i32, i32) {
    %c0_i32 = arith.constant 0 : i32
    %c0_i32_0 = arith.constant 0 : i32
    %c0_i32_1 = arith.constant 0 : i32
    return %c0_i32, %c0_i32_0 : i32, i32
  }
  func.func @transform_2(%arg0: i32) -> (i32, i32) {
    %c0_i32 = arith.constant 0 : i32
    %c0_i32_0 = arith.constant 0 : i32
    %c0_i32_1 = arith.constant 0 : i32
    return %c0_i32, %c0_i32_0 : i32, i32
  }
  func.func @transform_3(%arg0: i32) -> (i32, i32) {
    %c0_i32 = arith.constant 0 : i32
    %c0_i32_0 = arith.constant 0 : i32
    %c0_i32_1 = arith.constant 0 : i32
    return %c0_i32, %c0_i32_0 : i32, i32
  }
  func.func @transform_4(%arg0: i32) -> (i32, i32) {
    %c0_i32 = arith.constant 0 : i32
    %c0_i32_0 = arith.constant 0 : i32
    %c0_i32_1 = arith.constant 0 : i32
    return %c0_i32, %c0_i32_0 : i32, i32
  }
  func.func @transform_5(%arg0: i32) -> (i32, i32) {
    %c0_i32 = arith.constant 0 : i32
    %c0_i32_0 = arith.constant 0 : i32
    %c0_i32_1 = arith.constant 0 : i32
    return %c0_i32, %c0_i32_0 : i32, i32
  }
  func.func @transform_6(%arg0: i32) -> (i32, i32) {
    %c0_i32 = arith.constant 0 : i32
    %c0_i32_0 = arith.constant 0 : i32
    %c0_i32_1 = arith.constant 0 : i32
    return %c0_i32, %c0_i32_0 : i32, i32
  }
  func.func @transform_7(%arg0: i32) -> (i32, i32) {
    %c0_i32 = arith.constant 0 : i32
    %c0_i32_0 = arith.constant 0 : i32
    return %arg0, %c0_i32 : i32, i32
  }
}

</mosaic_0001>

<llo_original>
// kernel: mlp_forward.1
$region0: #{mlp_forward.1}
  #allocation0 [shape = 'u32[]', space=smem, size = 0x4, offset = 0x4, fixed_abs, tag = 'smem constant byte address 0x4 - core index']
  #allocation1 [shape = 'u32[144,128]{1,0:T(1,128)}', space=vmem, size = 0x12000, scoped, tag = 'internal scratch']
  #allocation2 [shape = 'f32[1,1]{1,0:T(1,128)S(6)}', space=smem, size = 0x200, scoped, tag = 'scoped memory for mlp_forward.1']
  %s0 = inlined_call_operand.hbm [shape: f32[8,32], index: 0, kind: input, shape index: {}]
  %s1 = inlined_call_operand.hbm [shape: f32[32,128], index: 1, kind: input, shape index: {}]
  %s2 = inlined_call_operand.vmem [shape: f32[1,128], index: 2, kind: input, shape index: {}]
  %s3 = inlined_call_operand.hbm [shape: f32[128,128], index: 3, kind: input, shape index: {}]
  %s4 = inlined_call_operand.vmem [shape: f32[1,128], index: 4, kind: input, shape index: {}]
  %s5 = inlined_call_operand.vmem [shape: f32[8,128], index: 5, kind: input, shape index: {}]
  %s6 = inlined_call_operand.<no memory space> [shape: f32[1,1], index: 6, kind: input, shape index: {}]
  %s7 = inlined_call_operand.hbm [shape: f32[1,8], index: 7, kind: output, shape index: {}]
  %s8 = sld [smem:[#allocation0]]
  $region50: #{mlp_forward.1} parent=0
    _
  %s10 = ssub.s32 1, %s8
  %s11 = scalar_select 0, %s10, %s8
  %12 = sst [smem:[#allocation2]] %s6
  $region1: #{mlp_forward.1} parent=0
    #allocation3 [shape = 'u8[4096]{0}', space=vmem, size = 0x1000, scoped, tag = 'input window, operand 0, single buffered']
    #allocation4 [shape = 's32[1]{0}', space=sflag, size = 0x4, scoped, tag = 'scoped memory for mlp_forward.1']
    #allocation5 [shape = 's32[1]{0}', space=sflag, size = 0x4, scoped, tag = 'scoped memory for mlp_forward.1']
    #allocation6 [shape = 'u8[16384]{0}', space=vmem, size = 0x4000, scoped, tag = 'input window, operand 1, single buffered']
    #allocation7 [shape = 's32[1]{0}', space=sflag, size = 0x4, scoped, tag = 'scoped memory for mlp_forward.1']
    #allocation8 [shape = 'u8[65536]{0}', space=vmem, size = 0x10000, scoped, tag = 'input window, operand 3, single buffered']
    #allocation9 [shape = 'u8[512]{0}', space=vmem, size = 0x400, scoped, tag = 'output window, operand 0, single buffered']
    %13 = vsyncpa [#allocation4], 0
    %14 = vsyncpa [#allocation7], 0
    %15 = vsyncpa [#allocation5], 0
    // Predicated region
    $region2: #{mlp_forward.1} parent=1 // pred_check
      _
    $region3: #{mlp_forward.1} parent=1 // pred_check_branch
      %17 = sbr.rel (0) target = $region5
    $region4: #{mlp_forward.1} parent=1 // pred_region
      %s19 = ssub.s32 128, 128
      %20 = vsyncadd [#allocation4], %s19
      %s22 = sshll.u32 [#allocation3], 4
      %s23 = int_to_ptr.vmem [resolvable:$true] %s22
      %25 = dma.hbm_to_vmem [thread:$0]  %s0, 128, %s23, [#allocation4]
    $region5: #{mlp_forward.1} parent=1 // pred_fallthru
      _
    // Predicated region
    $region6: #{mlp_forward.1} parent=1 // pred_check
      _
    $region7: #{mlp_forward.1} parent=1 // pred_check_branch
      %27 = sbr.rel (0) target = $region9
    $region8: #{mlp_forward.1} parent=1 // pred_region
      %s29 = ssub.s32 512, 512
      %30 = vsyncadd [#allocation7], %s29
      %s31 = sshll.u32 [#allocation6], 4
      %s32 = int_to_ptr.vmem [resolvable:$true] %s31
      %37 = dma.hbm_to_vmem [thread:$0]  %s1, 512, %s32, [#allocation7], 128, 128, 8
    $region9: #{mlp_forward.1} parent=1 // pred_fallthru
      _
    // Predicated region
    $region10: #{mlp_forward.1} parent=1 // pred_check
      _
    $region11: #{mlp_forward.1} parent=1 // pred_check_branch
      %39 = sbr.rel (0) target = $region13
    $region12: #{mlp_forward.1} parent=1 // pred_region
      _
    $region13: #{mlp_forward.1} parent=1 // pred_fallthru
      _
    // Predicated region
    $region14: #{mlp_forward.1} parent=1 // pred_check
      _
    $region15: #{mlp_forward.1} parent=1 // pred_check_branch
      %41 = sbr.rel (0) target = $region17
    $region16: #{mlp_forward.1} parent=1 // pred_region
      %s43 = ssub.s32 2048, 2048
      %44 = vsyncadd [#allocation7], %s43
      %s45 = sshll.u32 [#allocation8], 4
      %s46 = int_to_ptr.vmem [resolvable:$true] %s45
      %51 = dma.hbm_to_vmem [thread:$0]  %s3, 2048, %s46, [#allocation7], 128, 128, 8
    $region17: #{mlp_forward.1} parent=1 // pred_fallthru
      _
    // Predicated region
    $region18: #{mlp_forward.1} parent=1 // pred_check
      _
    $region19: #{mlp_forward.1} parent=1 // pred_check_branch
      %53 = sbr.rel (0) target = $region21
    $region20: #{mlp_forward.1} parent=1 // pred_region
      _
    $region21: #{mlp_forward.1} parent=1 // pred_fallthru
      _
    // Predicated region
    $region22: #{mlp_forward.1} parent=1 // pred_check
      _
    $region23: #{mlp_forward.1} parent=1 // pred_check_branch
      %55 = sbr.rel (0) target = $region25
    $region24: #{mlp_forward.1} parent=1 // pred_region
      _
    $region25: #{mlp_forward.1} parent=1 // pred_fallthru
      _
    // Predicated region
    $region26: #{mlp_forward.1} parent=1 // pred_check
      _
    $region27: #{mlp_forward.1} parent=1 // pred_check_branch
      %57 = sbr.rel (0) target = $region29
    $region28: #{mlp_forward.1} parent=1 // pred_region
      _
    $region29: #{mlp_forward.1} parent=1 // pred_fallthru
      _
    // Predicated region
    $region30: #{mlp_forward.1} parent=1 // pred_check
      _
    $region31: #{mlp_forward.1} parent=1 // pred_check_branch
      %59 = sbr.rel (0) target = $region33
    $region32: #{mlp_forward.1} parent=1 // pred_region
      %60 = dma.done [#allocation4], 128
    $region33: #{mlp_forward.1} parent=1 // pred_fallthru
      _
    // Predicated region
    $region34: #{mlp_forward.1} parent=1 // pred_check
      _
    $region35: #{mlp_forward.1} parent=1 // pred_check_branch
      %62 = sbr.rel (0) target = $region37
    $region36: #{mlp_forward.1} parent=1 // pred_region
      %63 = dma.done [#allocation7], 512
    $region37: #{mlp_forward.1} parent=1 // pred_fallthru
      _
    // Predicated region
    $region38: #{mlp_forward.1} parent=1 // pred_check
      _
    $region39: #{mlp_forward.1} parent=1 // pred_check_branch
      %65 = sbr.rel (0) target = $region41
    $region40: #{mlp_forward.1} parent=1 // pred_region
      %66 = dma.done [#allocation7], 2048
    $region41: #{mlp_forward.1} parent=1 // pred_fallthru
      _
    %v67 = vld [vmem:[#allocation3] sm:$0xff]
    %v68 = vld [vmem:[#allocation6] sm:$0xff]
    %v69 = vld [vmem:[#allocation6 + $0x8] sm:$0xff]
    %v70 = vld [vmem:[#allocation6 + $0x10] sm:$0xff]
    %v71 = vld [vmem:[#allocation6 + $0x18] sm:$0xff]
    %v72 = vld [vmem:[%s2] sm:$0x1]
    %v74 = vlaneseq
    %v75 = vshrl.u32 %v74, 7
    %v76 = vsub.s32 0, %v75
    %v77 = vrot.slane %v72, %v76
    %vm79 = vcmask 261120
    %v81 = vsel %vm79, %v67, 0
    %83 = vmatprep.subr.mxu0 0.0
    %84 = vmatpush1.msra.mxu0 %v68
    %85 = vmatprep.subr.mxu0 0.0
    %86 = vmatpush1.msra.mxu0 %v69
    %87 = vmatprep.subr.mxu0 0.0
    %88 = vmatpush1.msra.mxu0 %v70
    %89 = vmatprep.subr.mxu0 0.0
    %90 = vmatpush1.msra.mxu0 %v71
    %91 = vmatprep.subr.mxu0 0.0
    %92 = vmatpush1.msra.mxu0 0.0
    %93 = vmatprep.subr.mxu0 0.0
    %94 = vmatpush1.msra.mxu0 0.0
    %95 = vmatprep.subr.mxu0 0.0
    %96 = vmatpush1.msra.mxu0 0.0
    %97 = vmatprep.subr.mxu0 0.0
    %98 = vmatpush1.msra.mxu0 0.0
    %99 = vmatprep.subr.mxu0 0.0
    %100 = vmatpush1.msra.mxu0 0.0
    %101 = vmatprep.subr.mxu0 0.0
    %102 = vmatpush1.msra.mxu0 0.0
    %103 = vmatprep.subr.mxu0 0.0
    %104 = vmatpush1.msra.mxu0 0.0
    %105 = vmatprep.subr.mxu0 0.0
    %106 = vmatpush1.msra.mxu0 0.0
    %107 = vmatprep.subr.mxu0 0.0
    %108 = vmatpush1.msra.mxu0 0.0
    %109 = vmatprep.subr.mxu0 0.0
    %110 = vmatpush1.msra.mxu0 0.0
    %111 = vmatprep.subr.mxu0 0.0
    %112 = vmatpush1.msra.mxu0 0.0
    %113 = vmatprep.subr.mxu0 0.0
    %114 = vmatpush1.msra.mxu0 0.0
    %115 = vmatprep.subr.mxu0 0.0
    %116 = vmatpush1.msra.mxu0 0.0
    %117 = vmatprep.subr.mxu0 0.0
    %118 = vmatpush1.msra.mxu0 0.0
    %119 = vmatprep.subr.mxu0 0.0
    %120 = vmatpush1.msra.mxu0 0.0
    %121 = vmatprep.subr.mxu0 0.0
    %122 = vmatpush1.msra.mxu0 0.0
    %123 = vmatprep.subr.mxu0 0.0
    %124 = vmatpush1.msra.mxu0 0.0
    %125 = vmatprep.subr.mxu0 0.0
    %126 = vmatpush1.msra.mxu0 0.0
    %127 = vmatprep.subr.mxu0 0.0
    %128 = vmatpush1.msra.mxu0 0.0
    %129 = vmatprep.subr.mxu0 0.0
    %130 = vmatpush1.msra.mxu0 0.0
    %131 = vmatprep.subr.mxu0 0.0
    %132 = vmatpush1.msra.mxu0 0.0
    %133 = vmatprep.subr.mxu0 0.0
    %134 = vmatpush1.msra.mxu0 0.0
    %135 = vmatprep.subr.mxu0 0.0
    %136 = vmatpush1.msra.mxu0 0.0
    %137 = vmatprep.subr.mxu0 0.0
    %138 = vmatpush1.msra.mxu0 0.0
    %139 = vmatprep.subr.mxu0 0.0
    %140 = vmatpush1.msra.mxu0 0.0
    %141 = vmatprep.subr.mxu0 0.0
    %142 = vmatpush1.msra.mxu0 0.0
    %143 = vmatprep.subr.mxu0 0.0
    %144 = vmatpush1.msra.mxu0 0.0
    %145 = vmatprep.subr.mxu0 0.0
    %146 = vmatpush1.msra.mxu0 0.0
    %147 = vmatprep.mubr.f32.mxu0 0.0
    %148 = vmatmul.mubr.f32.gmra.mrb[0].mxu0 %v81
    %v149 = vpop.f32.mrb[0].mxu0
    %v150 = vadd.f32 %v77, %v149
    %v151 = vpop.f32.mrb[0].mxu0
    %152 = vdwg.mxu0
    %v153 = vmax.f32 %v150, 0.0
    %v154 = vld [vmem:[#allocation8] sm:$0xff]
    %v155 = vld [vmem:[#allocation8 + $0x8] sm:$0xff]
    %v156 = vld [vmem:[#allocation8 + $0x10] sm:$0xff]
    %v157 = vld [vmem:[#allocation8 + $0x18] sm:$0xff]
    %v158 = vld [vmem:[#allocation8 + $0x20] sm:$0xff]
    %v159 = vld [vmem:[#allocation8 + $0x28] sm:$0xff]
    %v160 = vld [vmem:[#allocation8 + $0x30] sm:$0xff]
    %v161 = vld [vmem:[#allocation8 + $0x38] sm:$0xff]
    %v162 = vld [vmem:[#allocation8 + $0x40] sm:$0xff]
    %v163 = vld [vmem:[#allocation8 + $0x48] sm:$0xff]
    %v164 = vld [vmem:[#allocation8 + $0x50] sm:$0xff]
    %v165 = vld [vmem:[#allocation8 + $0x58] sm:$0xff]
    %v166 = vld [vmem:[#allocation8 + $0x60] sm:$0xff]
    %v167 = vld [vmem:[#allocation8 + $0x68] sm:$0xff]
    %v168 = vld [vmem:[#allocation8 + $0x70] sm:$0xff]
    %v169 = vld [vmem:[#allocation8 + $0x78] sm:$0xff]
    %v170 = vld [vmem:[%s4] sm:$0x1]
    %v172 = vlaneseq
    %v173 = vshrl.u32 %v172, 7
    %v174 = vsub.s32 0, %v173
    %v175 = vrot.slane %v170, %v174
    %177 = vmatprep.subr.mxu0 0.0
    %178 = vmatpush1.msra.mxu0 %v154
    %179 = vmatprep.subr.mxu0 0.0
    %180 = vmatpush1.msra.mxu0 %v155
    %181 = vmatprep.subr.mxu0 0.0
    %182 = vmatpush1.msra.mxu0 %v156
    %183 = vmatprep.subr.mxu0 0.0
    %184 = vmatpush1.msra.mxu0 %v157
    %185 = vmatprep.subr.mxu0 0.0
    %186 = vmatpush1.msra.mxu0 %v158
    %187 = vmatprep.subr.mxu0 0.0
    %188 = vmatpush1.msra.mxu0 %v159
    %189 = vmatprep.subr.mxu0 0.0
    %190 = vmatpush1.msra.mxu0 %v160
    %191 = vmatprep.subr.mxu0 0.0
    %192 = vmatpush1.msra.mxu0 %v161
    %193 = vmatprep.subr.mxu0 0.0
    %194 = vmatpush1.msra.mxu0 %v162
    %195 = vmatprep.subr.mxu0 0.0
    %196 = vmatpush1.msra.mxu0 %v163
    %197 = vmatprep.subr.mxu0 0.0
    %198 = vmatpush1.msra.mxu0 %v164
    %199 = vmatprep.subr.mxu0 0.0
    %200 = vmatpush1.msra.mxu0 %v165
    %201 = vmatprep.subr.mxu0 0.0
    %202 = vmatpush1.msra.mxu0 %v166
    %203 = vmatprep.subr.mxu0 0.0
    %204 = vmatpush1.msra.mxu0 %v167
    %205 = vmatprep.subr.mxu0 0.0
    %206 = vmatpush1.msra.mxu0 %v168
    %207 = vmatprep.subr.mxu0 0.0
    %208 = vmatpush1.msra.mxu0 %v169
    %209 = vmatprep.subr.mxu0 0.0
    %210 = vmatpush1.msra.mxu0 0.0
    %211 = vmatprep.subr.mxu0 0.0
    %212 = vmatpush1.msra.mxu0 0.0
    %213 = vmatprep.subr.mxu0 0.0
    %214 = vmatpush1.msra.mxu0 0.0
    %215 = vmatprep.subr.mxu0 0.0
    %216 = vmatpush1.msra.mxu0 0.0
    %217 = vmatprep.subr.mxu0 0.0
    %218 = vmatpush1.msra.mxu0 0.0
    %219 = vmatprep.subr.mxu0 0.0
    %220 = vmatpush1.msra.mxu0 0.0
    %221 = vmatprep.subr.mxu0 0.0
    %222 = vmatpush1.msra.mxu0 0.0
    %223 = vmatprep.subr.mxu0 0.0
    %224 = vmatpush1.msra.mxu0 0.0
    %225 = vmatprep.subr.mxu0 0.0
    %226 = vmatpush1.msra.mxu0 0.0
    %227 = vmatprep.subr.mxu0 0.0
    %228 = vmatpush1.msra.mxu0 0.0
    %229 = vmatprep.subr.mxu0 0.0
    %230 = vmatpush1.msra.mxu0 0.0
    %231 = vmatprep.subr.mxu0 0.0
    %232 = vmatpush1.msra.mxu0 0.0
    %233 = vmatprep.subr.mxu0 0.0
    %234 = vmatpush1.msra.mxu0 0.0
    %235 = vmatprep.subr.mxu0 0.0
    %236 = vmatpush1.msra.mxu0 0.0
    %237 = vmatprep.subr.mxu0 0.0
    %238 = vmatpush1.msra.mxu0 0.0
    %239 = vmatprep.subr.mxu0 0.0
    %240 = vmatpush1.msra.mxu0 0.0
    %241 = vmatprep.mubr.f32.mxu0 0.0
    %242 = vmatmul.mubr.f32.gmra.mrb[0].mxu0 %v153
    %v243 = vpop.f32.mrb[0].mxu0
    %v244 = vadd.f32 %v175, %v243
    %v245 = vpop.f32.mrb[0].mxu0
    %246 = vdwg.mxu0
    %v247 = vmax.f32 %v244, 0.0
    %v248 = vld [vmem:[%s5] sm:$0xff]
    %249 = vmatprep.subr.mxu0 0.0
    %250 = vmatpush1.xpose.msra.mxu0 %v247
    %251 = vmatprep.subr.mxu0 0.0
    %252 = vmatpush1.xpose.msra.mxu0 0.0
    %253 = vmatprep.subr.mxu0 0.0
    %254 = vmatpush1.xpose.msra.mxu0 0.0
    %255 = vmatprep.subr.mxu0 0.0
    %256 = vmatpush1.xpose.msra.mxu0 0.0
    %257 = vmatprep.subr.mxu0 0.0
    %258 = vmatpush1.xpose.msra.mxu0 0.0
    %259 = vmatprep.subr.mxu0 0.0
    %260 = vmatpush1.xpose.msra.mxu0 0.0
    %261 = vmatprep.subr.mxu0 0.0
    %262 = vmatpush1.xpose.msra.mxu0 0.0
    %263 = vmatprep.subr.mxu0 0.0
    %264 = vmatpush1.xpose.msra.mxu0 0.0
    %265 = vmatprep.subr.mxu0 0.0
    %266 = vmatpush1.xpose.msra.mxu0 0.0
    %267 = vmatprep.subr.mxu0 0.0
    %268 = vmatpush1.xpose.msra.mxu0 0.0
    %269 = vmatprep.subr.mxu0 0.0
    %270 = vmatpush1.xpose.msra.mxu0 0.0
    %271 = vmatprep.subr.mxu0 0.0
    %272 = vmatpush1.xpose.msra.mxu0 0.0
    %273 = vmatprep.subr.mxu0 0.0
    %274 = vmatpush1.xpose.msra.mxu0 0.0
    %275 = vmatprep.subr.mxu0 0.0
    %276 = vmatpush1.xpose.msra.mxu0 0.0
    %277 = vmatprep.subr.mxu0 0.0
    %278 = vmatpush1.xpose.msra.mxu0 0.0
    %279 = vmatprep.subr.mxu0 0.0
    %280 = vmatpush1.xpose.msra.mxu0 0.0
    %281 = vmatprep.subr.mxu0 0.0
    %282 = vmatpush1.xpose.msra.mxu0 0.0
    %283 = vmatprep.subr.mxu0 0.0
    %284 = vmatpush1.xpose.msra.mxu0 0.0
    %285 = vmatprep.subr.mxu0 0.0
    %286 = vmatpush1.xpose.msra.mxu0 0.0
    %287 = vmatprep.subr.mxu0 0.0
    %288 = vmatpush1.xpose.msra.mxu0 0.0
    %289 = vmatprep.subr.mxu0 0.0
    %290 = vmatpush1.xpose.msra.mxu0 0.0
    %291 = vmatprep.subr.mxu0 0.0
    %292 = vmatpush1.xpose.msra.mxu0 0.0
    %293 = vmatprep.subr.mxu0 0.0
    %294 = vmatpush1.xpose.msra.mxu0 0.0
    %295 = vmatprep.subr.mxu0 0.0
    %296 = vmatpush1.xpose.msra.mxu0 0.0
    %297 = vmatprep.subr.mxu0 0.0
    %298 = vmatpush1.xpose.msra.mxu0 0.0
    %299 = vmatprep.subr.mxu0 0.0
    %300 = vmatpush1.xpose.msra.mxu0 0.0
    %301 = vmatprep.subr.mxu0 0.0
    %302 = vmatpush1.xpose.msra.mxu0 0.0
    %303 = vmatprep.subr.mxu0 0.0
    %304 = vmatpush1.xpose.msra.mxu0 0.0
    %305 = vmatprep.subr.mxu0 0.0
    %306 = vmatpush1.xpose.msra.mxu0 0.0
    %307 = vmatprep.subr.mxu0 0.0
    %308 = vmatpush1.xpose.msra.mxu0 0.0
    %309 = vmatprep.subr.mxu0 0.0
    %310 = vmatpush1.xpose.msra.mxu0 0.0
    %311 = vmatprep.subr.mxu0 0.0
    %312 = vmatpush1.xpose.msra.mxu0 0.0
    %313 = vmatprep.mubr.f32.mxu0 0.0
    %314 = vmatmul.mubr.f32.gmra.mrb[0].mxu0 %v248
    %v315 = vpop.f32.mrb[0].mxu0
    %v316 = vadd.f32 0.0, %v315
    %v317 = vpop.f32.mrb[0].mxu0
    %318 = vdwg.mxu0
    %vm319 = vcmask 64512
    %v320 = vsel %vm319, %v316, 0.0
    %v321 = vrot.slane %v320, 4
    %v322 = vadd.f32 %v320, %v321
    %v323 = vrot.slane %v322, 2
    %v324 = vadd.f32 %v322, %v323
    %v325 = vrot.slane %v324, 1
    %v326 = vadd.f32 %v324, %v325
    %s327 = sld [smem:[#allocation2]]
    %v328 = vstv %s327
    %v329 = vadd.f32 %v326, %v328
    %v330 = vxor.u32 %v329, 2147483648
    %v331 = vmul.f32 %v330, 1.442695
    %v332 = vpow.pop %v331
    %v333 = vadd.f32 %v332, 1.0
    %v334 = vrcp.pop %v333
    %v335 = vmul.f32 1.0, %v334
    %vm336 = vcmask 57344
    %337 = vst.msk [vmem:[#allocation9] sm:$0x1] %vm336, %v335
    // Predicated region
    $region42: #{mlp_forward.1} parent=1 // pred_check
      _
    $region43: #{mlp_forward.1} parent=1 // pred_check_branch
      %339 = sbr.rel (0) target = $region45
    $region44: #{mlp_forward.1} parent=1 // pred_region
      %s341 = ssub.s32 16, 16
      %342 = vsyncadd [#allocation5], %s341
      %s344 = sshll.u32 [#allocation9], 4
      %s345 = int_to_ptr.vmem [resolvable:$true] %s344
      %347 = dma.vmem_to_hbm [thread:$0]  %s345, 16, %s7, [#allocation5]
    $region45: #{mlp_forward.1} parent=1 // pred_fallthru
      _
    // Predicated region
    $region46: #{mlp_forward.1} parent=1 // pred_check
      _
    $region47: #{mlp_forward.1} parent=1 // pred_check_branch
      %349 = sbr.rel (0) target = $region49
    $region48: #{mlp_forward.1} parent=1 // pred_region
      %350 = dma.done [#allocation5], 16
    $region49: #{mlp_forward.1} parent=1 // pred_fallthru
      _
    %351 = vsyncpa [#allocation4], 1
    %352 = vsyncpa [#allocation7], 1
    %353 = vsyncpa [#allocation5], 1

</llo_original>
